<compile_context>
chip_gen: v5e
topology: v5e:2x2
jax: 0.10.0
libtpu: 0.0.40
codegen_flags: <defaults>
</compile_context>

<pallas_src>
import functools

import jax
import jax.numpy as jnp
from jax.experimental import pallas as pl
from jax.experimental.pallas import tpu as pltpu

EPS = 1e-20  # matches Squash(eps=1e-20)


def _round_up(x: int, m: int) -> int:
    return ((x + m - 1) // m) * m


def _vmem_capacity_bytes() -> int:
    """Physical per-core VMEM; conservative 64 MiB (v7x-sized) fallback."""
    try:
        return int(pltpu.get_tpu_info().vmem_capacity_bytes)
    except Exception:
        return 64 << 20


@functools.lru_cache(maxsize=None)
def _roll_is_jnp_convention() -> bool:
    """True iff pltpu.roll(x, s, axis)[j] == x[(j - s) % n] (jnp.roll semantics).

    Probed once (cached) so the butterfly's static lane mask always has the
    right polarity regardless of the rotate-direction convention.
    """
    def probe(x_ref, o_ref):
        o_ref[...] = pltpu.roll(x_ref[...], 1, axis=1)

    x = jnp.broadcast_to(jnp.arange(128, dtype=jnp.float32)[None, :], (8, 128))
    y = pl.pallas_call(probe,
                       out_shape=jax.ShapeDtypeStruct((8, 128), jnp.float32))(x)
    return float(y[0, 1]) == 0.0


def _make_primary_caps_kernel(dim_pad: int, roll_is_jnp: bool):
    """Fused matmul(grouped conv) + bias + capsule L2 norm + squash kernel.

    dim_pad: padded per-capsule lane count (power of two); capsules occupy
    dim_pad-aligned contiguous lanes (padded lanes hold exact zeros).
    """

    def kernel(x_ref, w_ref, b_ref, o_ref):
        # Grouped conv as one MXU matmul (bf16 operands, f32 accumulate).
        conv = jnp.dot(x_ref[...], w_ref[...],
                       preferred_element_type=jnp.float32) + b_ref[...]
        sq = conv * conv
        ocp = conv.shape[-1]
        # Segmented all-reduce of sq over dim_pad-aligned capsule groups via an
        # XOR butterfly of XLU lane rotations.  The select mask is a statically
        # known (1, ocp) pattern -> no rolled iota, no (TB, ocp) int32 temps.
        lane = jax.lax.broadcasted_iota(jnp.int32, (1, ocp), 1)
        k = 1
        while k < dim_pad:
            fwd = pltpu.roll(sq, ocp - k, axis=1)   # partner value at lane + k
            bwd = pltpu.roll(sq, k, axis=1)         # partner value at lane - k
            bit0 = (lane & k) == 0
            mask = bit0 if roll_is_jnp else jnp.logical_not(bit0)
            sq = sq + jnp.where(mask, fwd, bwd)
            k *= 2
        # Squash: coef = 1 - 1/(exp(||s||)+eps); unit = s/(||s||+eps).
        norm = jnp.sqrt(sq)
        coef = 1.0 - pl.reciprocal(jnp.exp(norm) + EPS, approx=False)  # exact
        inv_norm = pl.reciprocal(norm + EPS, approx=True)              # EUP
        o_ref[...] = (conv * (coef * inv_norm)).astype(o_ref.dtype)

    return kernel


def _pick_batch_tile(batch: int, ckk_p: int, oc_p: int, in_itemsize: int,
                     out_itemsize: int, tile_budget: int) -> int:
    """Whole batch in one grid step if it fits the budget; otherwise the
    largest aligned tile that fits AND yields >= 4 grid steps so the BlockSpec
    pipeline overlaps DMA with compute (and both v7x TCs see several steps)."""
    align = max(8, 32 // in_itemsize)            # 8 rows for f32, 16 for bf16
    b_al = _round_up(batch, align)

    def tile_bytes(t: int) -> int:
        x_tile = 2 * t * ckk_p * in_itemsize     # double-buffered activations
        o_tile = 2 * t * oc_p * out_itemsize     # double-buffered output
        f32_tmp = 4 * t * oc_p * 4               # conv/sq/roll f32 temporaries
        return x_tile + o_tile + f32_tmp

    if tile_bytes(b_al) <= tile_budget:
        return b_al                              # single grid step
    tb = b_al
    while tb > align and (tile_bytes(tb) > tile_budget or pl.cdiv(b_al, tb) < 4):
        tb = max(align, _round_up(tb // 2, align))
    return tb


def _vmem_limit_bytes(tb: int, ckk_p: int, oc_p: int, in_itemsize: int,
                      out_itemsize: int, cap: int) -> int:
    need = 2 * tb * ckk_p * in_itemsize          # x tile (double buffered)
    need += 2 * ckk_p * oc_p * in_itemsize       # resident weight (2 buffers)
    need += 2 * 8 * oc_p * 4                     # resident bias
    need += 2 * tb * oc_p * out_itemsize         # out tile (double buffered)
    need += 4 * tb * oc_p * 4                    # f32 epilogue temporaries
    need = int(need * 1.25) + (2 << 20)          # headroom (Mosaic scratch etc.)
    return int(min(max(need, 8 << 20), cap))


def prepare_primary_caps_weights(weight, bias, in_channels, num_capsules,
                                 dim_capsules, *, matmul_dtype=jnp.bfloat16):
    """One-time (per weight update) preprocessing -- hoisted out of the forward.

    Expands the grouped-conv weight (OC, 1, KH, KW) into an im2col-compatible
    block-diagonal dense matrix, laid out lane-dense as
    num_capsules x next_pow2(dim_capsules) (per-capsule zero padding), padded
    to MXU/lane-friendly shapes and cast to the matmul dtype.
    """
    OC, w_in, KH, KW = weight.shape
    C, N, D = int(in_channels), int(num_capsules), int(dim_capsules)
    assert w_in == 1, "grouped conv expected (weight shape (OC, 1, KH, KW))"
    assert OC == N * D and OC % C == 0
    G = OC // C                                  # filters per input channel
    KK = KH * KW
    CKK = C * KK
    Dp = int(pl.next_power_of_2(D))              # padded per-capsule lane count
    OCl = N * Dp                                 # logical padded output lanes
    OCp = _round_up(OCl, max(128, Dp))           # lane-dense, butterfly-aligned
    CKKp = _round_up(CKK, 128)

    # Scatter original output channels into the padded capsule-lane layout.
    lanes = jnp.arange(OCl)
    cap_idx, dim_idx = lanes // Dp, lanes % Dp
    valid = dim_idx < D
    src = jnp.clip(cap_idx * D + dim_idx, 0, OC - 1)               # orig channel
    w_flat = weight.reshape(OC, KK).astype(jnp.float32)
    w_lane = jnp.where(valid[:, None], w_flat[src], 0.0)           # (OCl, KK)
    b_lane = jnp.where(valid, bias.astype(jnp.float32)[src], 0.0)  # (OCl,)
    grp_of_o = jnp.where(valid, src // G, -1)                      # input group
    chan_of_i = jnp.arange(CKK) // KK
    blockmask = chan_of_i[:, None] == grp_of_o[None, :]            # (CKK, OCl)
    w_dense = jnp.where(blockmask, jnp.tile(w_lane.T, (C, 1)), 0.0)

    w_p = jnp.pad(w_dense, ((0, CKKp - CKK), (0, OCp - OCl))).astype(matmul_dtype)
    b_p = jnp.pad(b_lane, (0, OCp - OCl)).reshape(1, OCp)          # f32 bias row

    return dict(w=w_p, b=b_p, C=C, KH=KH, KW=KW, OC=OC, N=N, D=D, Dp=Dp,
                OCl=OCl, OCp=OCp, CKK=CKK, CKKp=CKKp,
                matmul_dtype=jnp.dtype(matmul_dtype))


def primary_caps_forward(x, params, *, stride=1, batch_tile=None,
                         out_dtype=jnp.bfloat16):
    """x: (B, C, H, W) NCHW.  params: from prepare_primary_caps_weights().

    Returns (B, num_capsules, dim_capsules) squashed capsules in `out_dtype`."""
    B, C, H, W = x.shape
    assert C == params["C"]
    # PrimaryCaps uses kernel_size == spatial extent -> 1x1 spatial output.
    assert (H, W) == (params["KH"], params["KW"]), \
        "kernel must cover the full spatial extent"
    del stride  # single valid window position -> stride is irrelevant
    N, D, Dp = params["N"], params["D"], params["Dp"]
    OCl, OCp = params["OCl"], params["OCp"]
    CKK, CKKp = params["CKK"], params["CKKp"]
    mm_dtype = params["matmul_dtype"]
    in_it = jnp.dtype(mm_dtype).itemsize
    out_it = jnp.dtype(out_dtype).itemsize

    # Generation-aware VMEM budget: never request the whole physical VMEM
    # (leaves room for Mosaic internal scratch; matters most on v7x's 64 MiB),
    # and subtract the resident weight/bias from the batch-tile budget.
    cap = int(0.85 * _vmem_capacity_bytes())
    resident = 2 * CKKp * OCp * in_it + 2 * 8 * OCp * 4
    tile_budget = max(cap - resident - (2 << 20), 2 << 20)

    TB = (_pick_batch_tile(B, CKKp, OCp, in_it, out_it, tile_budget)
          if batch_tile is None else int(batch_tile))
    Bp = _round_up(B, TB)

    # im2col: one valid window -> flatten (C, KH, KW); pad rows and lanes.
    x_p = jnp.pad(x.reshape(B, CKK).astype(mm_dtype),
                  ((0, Bp - B), (0, CKKp - CKK)))

    kernel = _make_primary_caps_kernel(Dp, _roll_is_jnp_convention())

    # NOTE: the constant-index weight/bias blocks are fetched once and never
    # re-fetched; they could additionally be single-buffered via
    # pipeline_mode=pl.Buffered(1) -- kept at the pipeline default here and
    # accounted for (x2) in the VMEM budget instead.
    out_flat = pl.pallas_call(
        kernel,
        out_shape=jax.ShapeDtypeStruct((Bp, OCp), out_dtype),
        grid=(Bp // TB,),
        in_specs=[
            pl.BlockSpec((TB, CKKp), lambda i: (i, 0)),    # batch-tiled x
            pl.BlockSpec((CKKp, OCp), lambda i: (0, 0)),   # resident weight
            pl.BlockSpec((1, OCp), lambda i: (0, 0)),      # resident bias
        ],
        out_specs=pl.BlockSpec((TB, OCp), lambda i: (i, 0)),
        compiler_params=pltpu.CompilerParams(
            dimension_semantics=("parallel",),   # shards steps on v7x's 2 TCs
            vmem_limit_bytes=_vmem_limit_bytes(TB, CKKp, OCp, in_it, out_it, cap),
        ),
    )(x_p, params["w"], params["b"])

    # Drop batch/lane padding; == torch .view(-1, num_capsules, dim_capsules).
    return out_flat[:B, :OCl].reshape(B, N, Dp)[:, :, :D]


def primary_caps_reference(x, weight, bias, num_capsules, dim_capsules, stride=1):
    """Pure-JAX reference mirroring the PyTorch module exactly (f32)."""
    B, C, H, W = x.shape
    conv = jax.lax.conv_general_dilated(
        x, weight, window_strides=(stride, stride), padding="VALID",
        dimension_numbers=("NCHW", "OIHW", "NCHW"), feature_group_count=C,
        precision=jax.lax.Precision.HIGHEST)
    conv = conv + bias.reshape(1, -1, 1, 1)
    caps = conv.reshape(-1, num_capsules, dim_capsules)
    norm = jnp.sqrt(jnp.sum(caps * caps, axis=-1, keepdims=True))
    coef = 1.0 - 1.0 / (jnp.exp(norm) + EPS)
    return coef * caps / (norm + EPS)


if __name__ == "__main__":
    # PrimaryCaps(in_channels=4, kernel_size=8, capsule_size=(8, 4)) on a
    # (32, 4, 8, 8) NCHW input.  The auto tile-picker collapses this to a
    # single grid step (whole batch resident), per the perf review.
    B, C, H, W = 32, 4, 8, 8
    K = 8
    N_CAPS, D_CAPS = 8, 4
    OC = N_CAPS * D_CAPS

    key = jax.random.PRNGKey(0)
    k_w, k_b, k_x = jax.random.split(key, 3)
    fan_in = 1 * K * K                       # groups=C -> 1 input channel/filter
    bound = 1.0 / (fan_in ** 0.5)            # PyTorch Conv2d default init bound
    weight = jax.random.uniform(k_w, (OC, 1, K, K), minval=-bound, maxval=bound,
                                dtype=jnp.float32)
    bias = jax.random.uniform(k_b, (OC,), minval=-bound, maxval=bound,
                              dtype=jnp.float32)
    x = jax.random.normal(k_x, (B, C, H, W), dtype=jnp.float32)

    # Weight preprocessing hoisted out of the per-call path (once per update).
    params = prepare_primary_caps_weights(weight, bias, C, N_CAPS, D_CAPS)

    out = primary_caps_forward(x, params)
    out = jax.block_until_ready(out)
    assert out.shape == (B, N_CAPS, D_CAPS)
    out_f32 = out.astype(jnp.float32)
    assert bool(jnp.all(jnp.isfinite(out_f32)))

    # Tight check: reference fed the same bf16-rounded conv operands as the MXU
    # (remaining delta = accumulation order + approx 1/||s|| + bf16 output).
    x_bf = x.astype(jnp.bfloat16).astype(jnp.float32)
    w_bf = weight.astype(jnp.bfloat16).astype(jnp.float32)
    ref_bf16 = primary_caps_reference(x_bf, w_bf, bias, N_CAPS, D_CAPS)
    assert jnp.allclose(out_f32, ref_bf16, rtol=2e-2, atol=2e-2)

    # Loose check: full-f32 reference (bounds the bf16-operand effect).
    ref_f32 = primary_caps_reference(x, weight, bias, N_CAPS, D_CAPS)
    assert jnp.allclose(out_f32, ref_f32, rtol=6e-2, atol=6e-2)

    print("KERNEL_OK")
</pallas_src>

<mosaic_0001>
module attributes {stable_mosaic.version = 11 : i64} {
  func.func @probe(%arg0: memref<8x128xf32, #tpu.memory_space<vmem>>, %arg1: memref<8x128xf32, #tpu.memory_space<vmem>>) attributes {dimension_semantics = [], scalar_prefetch = 0 : i64, scratch_operands = 0 : i64, tpu.core_type = #tpu.core_type<tc>} {
    %c0 = arith.constant 0 : index
    %c0_0 = arith.constant 0 : index
    %0 = vector.load %arg0[%c0, %c0_0] : memref<8x128xf32, #tpu.memory_space<vmem>>, vector<8x128xf32>
    %c1_i32 = arith.constant 1 : i32
    %1 = tpu.dynamic_rotate %0 by %c1_i32 dim 1 : vector<8x128xf32>, i32 -> vector<8x128xf32>
    %c0_1 = arith.constant 0 : index
    %c0_2 = arith.constant 0 : index
    %2 = vector.load %arg1[%c0_1, %c0_2] : memref<8x128xf32, #tpu.memory_space<vmem>>, vector<8x128xf32>
    tpu.vector_store %arg1[%c0_1, %c0_2], %1 {strides = array<i32>} : memref<8x128xf32, #tpu.memory_space<vmem>>, vector<8x128xf32>,
    return
  }
}

</mosaic_0001>

<llo_original>
// kernel: tpu_custom_call.1
$region0: #{tpu_custom_call.1}
  #allocation0 [shape = 'u32[]', space=smem, size = 0x4, offset = 0x4, fixed_abs, tag = 'smem constant byte address 0x4 - core index']
  #allocation1 [shape = 'u32[72,128]{1,0:T(1,128)}', space=vmem, size = 0x9000, scoped, tag = 'internal scratch']
  %s0 = inlined_call_operand.hbm [shape: f32[8,128], index: 0, kind: input, shape index: {}]
  %s1 = inlined_call_operand.hbm [shape: f32[8,128], index: 1, kind: output, shape index: {}]
  %s2 = sld [smem:[#allocation0]]
  $region18: #{tpu_custom_call.1} parent=0
    _
  %s4 = ssub.s32 1, %s2
  %s5 = scalar_select 0, %s4, %s2
  $region1: #{tpu_custom_call.1} parent=0
    #allocation2 [shape = 'u8[4096]{0}', space=vmem, size = 0x1000, scoped, tag = 'input window, operand 0, single buffered']
    #allocation3 [shape = 's32[1]{0}', space=sflag, size = 0x4, scoped, tag = 'scoped memory for tpu_custom_call.1']
    #allocation4 [shape = 's32[1]{0}', space=sflag, size = 0x4, scoped, tag = 'scoped memory for tpu_custom_call.1']
    #allocation5 [shape = 'u8[4096]{0}', space=vmem, size = 0x1000, scoped, tag = 'output window, operand 0, single buffered']
    %6 = vsyncpa [#allocation3], 0
    %7 = vsyncpa [#allocation4], 0
    // Predicated region
    $region2: #{tpu_custom_call.1} parent=1 // pred_check
      _
    $region3: #{tpu_custom_call.1} parent=1 // pred_check_branch
      %9 = sbr.rel (0) target = $region5
    $region4: #{tpu_custom_call.1} parent=1 // pred_region
      %11 = vsyncadd [#allocation3], 0
      %s13 = sshll.u32 %s0, 4
      %s14 = int_to_ptr.hbm [resolvable:$true] %s13
      %s15 = sshll.u32 [#allocation2], 4
      %s16 = int_to_ptr.vmem [resolvable:$true] %s15
      %18 = dma.hbm_to_vmem [thread:$0]  %s14, 128, %s16, [#allocation3]
    $region5: #{tpu_custom_call.1} parent=1 // pred_fallthru
      _
    // Predicated region
    $region6: #{tpu_custom_call.1} parent=1 // pred_check
      _
    $region7: #{tpu_custom_call.1} parent=1 // pred_check_branch
      %20 = sbr.rel (0) target = $region9
    $region8: #{tpu_custom_call.1} parent=1 // pred_region
      %22 = dma.done [#allocation3], 128
    $region9: #{tpu_custom_call.1} parent=1 // pred_fallthru
      _
    %v23 = vld [vmem:[#allocation2] sm:$0xff]
    %24 = vrot.lane.b32.xlu0 %v23, 1
    %v25 = vpop.permute.xlu0 %24
    %26 = vst [vmem:[#allocation5] sm:$0xff] %v25
    // Predicated region
    $region10: #{tpu_custom_call.1} parent=1 // pred_check
      _
    $region11: #{tpu_custom_call.1} parent=1 // pred_check_branch
      %28 = sbr.rel (0) target = $region13
    $region12: #{tpu_custom_call.1} parent=1 // pred_region
      %30 = vsyncadd [#allocation4], 0
      %s32 = sshll.u32 [#allocation5], 4
      %s33 = int_to_ptr.vmem [resolvable:$true] %s32
      %s34 = sshll.u32 %s1, 4
      %s35 = int_to_ptr.hbm [resolvable:$true] %s34
      %37 = dma.vmem_to_hbm [thread:$0]  %s33, 128, %s35, [#allocation4]
    $region13: #{tpu_custom_call.1} parent=1 // pred_fallthru
      _
    // Predicated region
    $region14: #{tpu_custom_call.1} parent=1 // pred_check
      _
    $region15: #{tpu_custom_call.1} parent=1 // pred_check_branch
      %39 = sbr.rel (0) target = $region17
    $region16: #{tpu_custom_call.1} parent=1 // pred_region
      %41 = dma.done [#allocation4], 128
    $region17: #{tpu_custom_call.1} parent=1 // pred_fallthru
      _
    %42 = vsyncpa [#allocation3], 1
    %43 = vsyncpa [#allocation4], 1

</llo_original>
